<compile_context>
chip_gen: v7x
topology: tpu7x:2x2x1
jax: 0.10.0
libtpu: 0.0.40
codegen_flags: <defaults>
</compile_context>

<pallas_src>
import numpy as np
import jax
import jax.numpy as jnp
from jax.experimental import pallas as pl
from jax.experimental.pallas import tpu as pltpu

_EPS = 1e-5
_PREC = jax.lax.Precision.HIGHEST   # reference path only


# ----------------------------- in-kernel helpers -----------------------------
def _stack_taps(stack_ref, phases, taps, lane_pos, L, q_max):
    """im2col into a VMEM scratch.

    phases   : list of (C, N*L) f32 slabs (phase r holds positions m*ds + r).
    taps     : list of static (phase_index r, lane_shift q) per conv tap.
    lane_pos : (1, N*L) int32, within-sample position of every lane (precomputed).
    Returns a (K*C, N*L) bf16 block whose row-block k equals phases[r_k] shifted
    by q_k lanes, zeroed outside each length-L sample window.  Implemented with
    static-offset partial stores (no concatenate / roll / strided access).  Only
    the |q|-wide strip of the read window that the shifted store does not cover
    is explicitly zeroed (global padding); the rest is fully overwritten.
    """
    C, NL = phases[0].shape
    K = len(taps)
    for k, (r, q) in enumerate(taps):
        src = phases[r]
        if q != 0:
            # zero source lanes that would be read by a *neighbouring* sample
            keep = (lane_pos >= q) if q > 0 else (lane_pos < L + q)
            src = jnp.where(keep, src, 0.0)
        stack_ref[k * C:(k + 1) * C, q_max - q:q_max - q + NL] = src
        # zero the part of the read window [q_max, q_max+NL) not covered by the
        # shifted store (== global zero-padding of the convolution)
        if q > 0:
            stack_ref[k * C:(k + 1) * C, q_max + NL - q:q_max + NL] = \
                jnp.zeros((C, q), jnp.float32)
        elif q < 0:
            stack_ref[k * C:(k + 1) * C, q_max:q_max - q] = \
                jnp.zeros((C, -q), jnp.float32)
    return stack_ref[0:K * C, q_max:q_max + NL].astype(jnp.bfloat16)


def _bn_act(phases, gamma, beta, relu):
    """Training-mode BatchNorm1d fused to one scale/shift (+ optional ReLU).

    One-pass stats (sum / sum-of-squares) over every lane of every phase slab,
    i.e. over batch x length, matching nn.BatchNorm1d training behaviour.
    """
    cnt = sum(p.shape[1] for p in phases)
    s = ssq = None
    for p in phases:
        ps = jnp.sum(p, axis=1, keepdims=True)
        pq = jnp.sum(p * p, axis=1, keepdims=True)
        s = ps if s is None else s + ps
        ssq = pq if ssq is None else ssq + pq
    mean = s * (1.0 / cnt)
    var = ssq * (1.0 / cnt) - mean * mean
    scale = gamma * jax.lax.rsqrt(var + _EPS)
    shift = beta - mean * scale
    out = []
    for p in phases:
        o = p * scale + shift
        if relu:
            o = jnp.maximum(o, 0.0)
        out.append(o)
    return out


def _build_block_kernel(cfgs, q_max):
    """Returns (kernel_fn, num_inputs) for the fully fused ResidualBlock."""
    n_in = 2 + sum(8 if c['has_skip'] else 6 for c in cfgs)
    L = cfgs[0]['L']   # constant across all layers of a ResidualBlock

    def kernel(*refs):
        in_refs = refs[:n_in]
        xo_ref, yo_ref = refs[n_in], refs[n_in + 1]
        stack_ref = refs[n_in + 2]

        # Layer-0 inputs arrive phase-split: (ds0*Cin0, N*L).
        ds0, cin0 = cfgs[0]['ds'], cfgs[0]['Cin']
        xv = in_refs[0][...]
        yv = in_refs[1][...]
        x_ph = [xv[r * cin0:(r + 1) * cin0, :] for r in range(ds0)]
        y_ph = [yv[r * cin0:(r + 1) * cin0, :] for r in range(ds0)]

        NL = xv.shape[1]
        # Within-sample lane position (used for per-sample boundary masks),
        # computed ONCE for the whole block.
        lane_pos = jax.lax.broadcasted_iota(jnp.int32, (1, NL), 1) % L

        pos = 2
        for c in cfgs:
            K, ds, pad = c['K'], c['ds'], c['pad']
            w1f = in_refs[pos][...]
            g1, b1 = in_refs[pos + 1][...], in_refs[pos + 2][...]
            w2f = in_refs[pos + 3][...]
            g2, b2 = in_refs[pos + 4][...], in_refs[pos + 5][...]

            # conv_1 (stride 1, no bias): one matmul per output phase, the K taps
            # folded into the contraction dimension.
            h_ph = []
            for rp in range(ds):
                taps = [((rp + k - pad) % ds, (rp + k - pad) // ds) for k in range(K)]
                stacked = _stack_taps(stack_ref, x_ph, taps, lane_pos, L, q_max)
                h_ph.append(jnp.dot(w1f, stacked, preferred_element_type=jnp.float32))
            # bn_1 + ReLU (+ Dropout(p=0) == identity), fused scale/shift
            h_ph = _bn_act(h_ph, g1, b1, relu=True)

            # conv_2 (stride = ds, folded into the phase selection): one matmul.
            taps = [((k - pad) % ds, (k - pad) // ds) for k in range(K)]
            stacked = _stack_taps(stack_ref, h_ph, taps, lane_pos, L, q_max)
            z = jnp.dot(w2f, stacked, preferred_element_type=jnp.float32)
            z = _bn_act([z], g2, b2, relu=False)[0]

            # Skip path: AvgPool1d(ds) == mean of the phases; 1x1 conv only when the
            # channel counts differ (identity ops elided at trace time).
            yp = y_ph[0] if ds == 1 else sum(y_ph) * (1.0 / ds)
            if c['has_skip']:
                sw = in_refs[pos + 6][...]
                sb = in_refs[pos + 7][...]
                ys = jnp.dot(sw, yp.astype(jnp.bfloat16),
                             preferred_element_type=jnp.float32) + sb
                pos += 8
            else:
                ys = yp
                pos += 6

            added = z + ys
            x_ph = [jnp.maximum(added, 0.0)]   # activation_2; Dropout(p=0) == identity
            y_ph = [added]

        xo_ref[...] = x_ph[0]
        yo_ref[...] = y_ph[0]

    return kernel, n_in


# --------------------------------- wrapper -----------------------------------
def make_layer_params(key, in_ch, out_ch, K, in_sm, out_sm, N):
    assert in_sm % out_sm == 0 and K % 2 == 1
    ds = in_sm // out_sm
    pad = (K - 1) // 2
    ks = jax.random.split(key, 8)
    p = {}
    p['w1'] = jax.random.normal(ks[0], (out_ch, in_ch, K), jnp.float32) / np.sqrt(in_ch * K)
    p['w2'] = jax.random.normal(ks[1], (out_ch, out_ch, K), jnp.float32) / np.sqrt(out_ch * K)
    p['g1'] = 1.0 + 0.1 * jax.random.normal(ks[2], (out_ch,), jnp.float32)
    p['b1'] = 0.1 * jax.random.normal(ks[3], (out_ch,), jnp.float32)
    p['g2'] = 1.0 + 0.1 * jax.random.normal(ks[4], (out_ch,), jnp.float32)
    p['b2'] = 0.1 * jax.random.normal(ks[5], (out_ch,), jnp.float32)
    has_skip = in_ch != out_ch
    if has_skip:
        p['sw'] = jax.random.normal(ks[6], (out_ch, in_ch), jnp.float32) / np.sqrt(in_ch)
        p['sb'] = 0.1 * jax.random.normal(ks[7], (out_ch,), jnp.float32)
        p['swf'] = p['sw'].astype(jnp.bfloat16)
        p['sbc'] = p['sb'][:, None]
    # Kernel-layout params, precomputed once (no per-call transposes/casts):
    # folded weights (Cout, K*Cin) with tap-major / channel-minor ordering.
    p['w1f'] = jnp.transpose(p['w1'], (0, 2, 1)).reshape(out_ch, K * in_ch).astype(jnp.bfloat16)
    p['w2f'] = jnp.transpose(p['w2'], (0, 2, 1)).reshape(out_ch, K * out_ch).astype(jnp.bfloat16)
    p['g1c'], p['b1c'] = p['g1'][:, None], p['b1'][:, None]
    p['g2c'], p['b2c'] = p['g2'][:, None], p['b2'][:, None]
    p['ds'] = ds
    p['has_skip'] = has_skip
    p['out_samples'] = out_sm
    p['cfg'] = dict(K=K, Cin=in_ch, Cout=out_ch, ds=ds, pad=pad, has_skip=has_skip, L=out_sm)
    return p


def residual_block_forward(x, y, layer_params):
    """x, y: (N, C_in, L_in) as in PyTorch. Returns (x_out, y_out): (N, C_out, L_out)."""
    N = x.shape[0]
    cfgs = [lp['cfg'] for lp in layer_params]
    # ResidualBlock guarantees only the first layer can change the sample rate.
    assert all(c['ds'] == 1 for c in cfgs[1:])
    L = cfgs[0]['L']                      # per-sample lane length inside the kernel
    NL = N * L
    ds0 = cfgs[0]['ds']

    def to_phase(a, ds):                  # (N, C, Li) -> (ds*C, N*(Li//ds))
        Nn, C, Li = a.shape
        Lo = Li // ds
        b = a.reshape(Nn, C, Lo, ds)
        return jnp.transpose(b, (3, 1, 0, 2)).reshape(ds * C, Nn * Lo)

    def from_k(a):                        # (C, N*L) -> (N, C, L)
        return jnp.transpose(a.reshape(a.shape[0], N, L), (1, 0, 2))

    inputs = [to_phase(x, ds0), to_phase(y, ds0)]
    for lp in layer_params:
        inputs += [lp['w1f'], lp['g1c'], lp['b1c'], lp['w2f'], lp['g2c'], lp['b2c']]
        if lp['cfg']['has_skip']:
            inputs += [lp['swf'], lp['sbc']]

    c_out = cfgs[-1]['Cout']
    max_kc = max(c['K'] * max(c['Cin'], c['Cout']) for c in cfgs)
    q_max = max(c['pad'] for c in cfgs)

    kernel, n_in = _build_block_kernel(cfgs, q_max)
    assert n_in == len(inputs)

    vm = pl.BlockSpec(memory_space=pltpu.MemorySpace.VMEM)
    xk, yk = pl.pallas_call(
        kernel,
        out_shape=(jax.ShapeDtypeStruct((c_out, NL), jnp.float32),
                   jax.ShapeDtypeStruct((c_out, NL), jnp.float32)),
        in_specs=[vm] * len(inputs),
        out_specs=(vm, vm),
        scratch_shapes=[pltpu.VMEM((max_kc, NL + 2 * q_max), jnp.float32)],
        compiler_params=pltpu.CompilerParams(vmem_limit_bytes=32 * 1024 * 1024),
    )(*inputs)
    return from_k(xk), from_k(yk)


# ---------------- pure-JAX reference (for correctness check) ----------------
def _ref_layer(x, y, lp):
    K = lp['w1'].shape[2]
    pad = (K - 1) // 2
    ds = lp['ds']

    def conv(inp, w, s):
        return jax.lax.conv_general_dilated(
            inp, w, window_strides=(s,), padding=[(pad, pad)],
            dimension_numbers=('NCH', 'OIH', 'NCH'), precision=_PREC)

    def bn(h, g, b):
        mean = h.mean(axis=(0, 2), keepdims=True)
        var = ((h - mean) ** 2).mean(axis=(0, 2), keepdims=True)
        return g[None, :, None] * (h - mean) / jnp.sqrt(var + _EPS) + b[None, :, None]

    h = jnp.maximum(bn(conv(x, lp['w1'], 1), lp['g1'], lp['b1']), 0.0)
    z = bn(conv(h, lp['w2'], ds), lp['g2'], lp['b2'])
    if lp['has_skip']:
        ys = jnp.einsum('oi,nil->nol', lp['sw'], y, precision=_PREC) + lp['sb'][None, :, None]
    else:
        ys = y
    if ds > 1:
        Nn, C, L = ys.shape
        yp = ys.reshape(Nn, C, L // ds, ds).mean(axis=-1)
    else:
        yp = ys
    added = z + yp
    return jnp.maximum(added, 0.0), added


def _ref_block(x, y, layer_params):
    for lp in layer_params:
        x, y = _ref_layer(x, y, lp)
    return x, y


if __name__ == "__main__":
    # ResidualBlock(in_samples=16, out_samples=8, in_channels=4, out_channels=8,
    #               kernel_size=3, num_layers=2), batch N = 2
    N = 2
    in_channels, out_channels = 4, 8
    in_samples, out_samples = 16, 8
    kernel_size, num_layers = 3, 2

    key = jax.random.PRNGKey(0)
    kx, ky, kp = jax.random.split(key, 3)
    x = jax.random.normal(kx, (N, in_channels, in_samples), jnp.float32)
    y = jax.random.normal(ky, (N, in_channels, in_samples), jnp.float32)

    layer_params = []
    pkeys = jax.random.split(kp, num_layers)
    for i in range(num_layers):
        in_ch = in_channels if i == 0 else out_channels
        in_sm = in_samples if i == 0 else out_samples
        layer_params.append(
            make_layer_params(pkeys[i], in_ch, out_channels, kernel_size,
                              in_sm, out_samples, N))

    out_x, out_y = residual_block_forward(x, y, layer_params)
    out_x, out_y = jax.block_until_ready((out_x, out_y))

    ref_x, ref_y = _ref_block(x, y, layer_params)
    assert out_x.shape == (N, out_channels, out_samples)
    assert out_y.shape == (N, out_channels, out_samples)
    # Tolerance relaxed vs the f32/HIGHEST reference because the kernel feeds the
    # MXU bf16 operands; indexing/BN bugs would be O(1) errors, far above this.
    np.testing.assert_allclose(np.asarray(out_x), np.asarray(ref_x), rtol=5e-2, atol=5e-2)
    np.testing.assert_allclose(np.asarray(out_y), np.asarray(ref_y), rtol=5e-2, atol=5e-2)
    print("KERNEL_OK")
</pallas_src>

<mosaic_0001>
module attributes {stable_mosaic.version = 11 : i64} {
  func.func @kernel(%arg0: memref<8x16xf32, #tpu.memory_space<vmem>>, %arg1: memref<8x16xf32, #tpu.memory_space<vmem>>, %arg2: memref<8x12xbf16, #tpu.memory_space<vmem>>, %arg3: memref<8x1xf32, #tpu.memory_space<vmem>>, %arg4: memref<8x1xf32, #tpu.memory_space<vmem>>, %arg5: memref<8x24xbf16, #tpu.memory_space<vmem>>, %arg6: memref<8x1xf32, #tpu.memory_space<vmem>>, %arg7: memref<8x1xf32, #tpu.memory_space<vmem>>, %arg8: memref<8x4xbf16, #tpu.memory_space<vmem>>, %arg9: memref<8x1xf32, #tpu.memory_space<vmem>>, %arg10: memref<8x24xbf16, #tpu.memory_space<vmem>>, %arg11: memref<8x1xf32, #tpu.memory_space<vmem>>, %arg12: memref<8x1xf32, #tpu.memory_space<vmem>>, %arg13: memref<8x24xbf16, #tpu.memory_space<vmem>>, %arg14: memref<8x1xf32, #tpu.memory_space<vmem>>, %arg15: memref<8x1xf32, #tpu.memory_space<vmem>>, %arg16: memref<8x16xf32, #tpu.memory_space<vmem>>, %arg17: memref<8x16xf32, #tpu.memory_space<vmem>>, %arg18: memref<24x18xf32, #tpu.memory_space<vmem>>) attributes {dimension_semantics = [], scalar_prefetch = 0 : i64, scratch_operands = 1 : i64, tpu.core_type = #tpu.core_type<tc>} {
    %c0 = arith.constant 0 : index
    %c0_0 = arith.constant 0 : index
    %0 = vector.load %arg0[%c0, %c0_0] : memref<8x16xf32, #tpu.memory_space<vmem>>, vector<8x16xf32>
    %c0_1 = arith.constant 0 : index
    %c0_2 = arith.constant 0 : index
    %1 = vector.load %arg1[%c0_1, %c0_2] : memref<8x16xf32, #tpu.memory_space<vmem>>, vector<8x16xf32>
    %2 = vector.extract_strided_slice %0 {offsets = [0, 0], sizes = [4, 16], strides = [1, 1]} : vector<8x16xf32> to vector<4x16xf32>
    %3 = vector.extract_strided_slice %0 {offsets = [4, 0], sizes = [4, 16], strides = [1, 1]} : vector<8x16xf32> to vector<4x16xf32>
    %4 = vector.extract_strided_slice %1 {offsets = [0, 0], sizes = [4, 16], strides = [1, 1]} : vector<8x16xf32> to vector<4x16xf32>
    %5 = vector.extract_strided_slice %1 {offsets = [4, 0], sizes = [4, 16], strides = [1, 1]} : vector<8x16xf32> to vector<4x16xf32>
    %6 = tpu.iota {dimensions = array<i32: 1>} : vector<1x16xi32>
    %c8_i32 = arith.constant 8 : i32
    %c0_i32 = arith.constant 0 : i32
    %7 = arith.cmpi eq, %c8_i32, %c0_i32 : i32
    %c1_i32 = arith.constant 1 : i32
    %8 = arith.select %7, %c1_i32, %c8_i32 : i32
    %9 = vector.broadcast %8 : i32 to vector<1x16xi32>
    %10 = arith.remsi %6, %9 : vector<1x16xi32>
    %c0_i32_3 = arith.constant 0 : i32
    %11 = vector.broadcast %c0_i32_3 : i32 to vector<1x16xi32>
    %12 = arith.cmpi ne, %10, %11 : vector<1x16xi32>
    %c0_i32_4 = arith.constant 0 : i32
    %13 = vector.broadcast %c0_i32_4 : i32 to vector<1x16xi32>
    %14 = arith.cmpi slt, %10, %13 : vector<1x16xi32>
    %c0_i32_5 = arith.constant 0 : i32
    %15 = arith.cmpi slt, %8, %c0_i32_5 : i32
    %16 = vector.broadcast %15 : i1 to vector<1x16xi1>
    %17 = vector.broadcast %16 : vector<1x16xi1> to vector<1x16xi1>
    %18 = arith.xori %14, %17 : vector<1x16xi1>
    %19 = arith.andi %18, %12 : vector<1x16xi1>
    %20 = vector.broadcast %8 : i32 to vector<1x16xi32>
    %21 = arith.addi %10, %20 : vector<1x16xi32>
    %22 = arith.select %19, %21, %10 : vector<1x16xi1>, vector<1x16xi32>
    %c0_6 = arith.constant 0 : index
    %c0_7 = arith.constant 0 : index
    %23 = vector.load %arg2[%c0_6, %c0_7] : memref<8x12xbf16, #tpu.memory_space<vmem>>, vector<8x12xbf16>
    %c0_8 = arith.constant 0 : index
    %c0_9 = arith.constant 0 : index
    %24 = vector.load %arg3[%c0_8, %c0_9] : memref<8x1xf32, #tpu.memory_space<vmem>>, vector<8x1xf32>
    %c0_10 = arith.constant 0 : index
    %c0_11 = arith.constant 0 : index
    %25 = vector.load %arg4[%c0_10, %c0_11] : memref<8x1xf32, #tpu.memory_space<vmem>>, vector<8x1xf32>
    %c0_12 = arith.constant 0 : index
    %c0_13 = arith.constant 0 : index
    %26 = vector.load %arg5[%c0_12, %c0_13] : memref<8x24xbf16, #tpu.memory_space<vmem>>, vector<8x24xbf16>
    %c0_14 = arith.constant 0 : index
    %c0_15 = arith.constant 0 : index
    %27 = vector.load %arg6[%c0_14, %c0_15] : memref<8x1xf32, #tpu.memory_space<vmem>>, vector<8x1xf32>
    %c0_16 = arith.constant 0 : index
    %c0_17 = arith.constant 0 : index
    %28 = vector.load %arg7[%c0_16, %c0_17] : memref<8x1xf32, #tpu.memory_space<vmem>>, vector<8x1xf32>
    %c7_i32 = arith.constant 7 : i32
    %29 = vector.broadcast %c7_i32 : i32 to vector<1x16xi32>
    %30 = arith.cmpi slt, %22, %29 : vector<1x16xi32>
    %cst = arith.constant 0.000000e+00 : f32
    %31 = vector.shape_cast %30 : vector<1x16xi1> to vector<1x16xi1>
    %32 = vector.broadcast %31 : vector<1x16xi1> to vector<4x16xi1>
    %33 = vector.broadcast %cst : f32 to vector<4x16xf32>
    %34 = arith.select %32, %3, %33 : vector<4x16xi1>, vector<4x16xf32>
    %c0_18 = arith.constant 0 : index
    %c2 = arith.constant 2 : index
    %35 = vector.load %arg18[%c0_18, %c2] : memref<24x18xf32, #tpu.memory_space<vmem>>, vector<4x16xf32>
    tpu.vector_store %arg18[%c0_18, %c2], %34 {strides = array<i32>} : memref<24x18xf32, #tpu.memory_space<vmem>>, vector<4x16xf32>,
    %cst_19 = arith.constant 0.000000e+00 : f32
    %36 = vector.broadcast %cst_19 : f32 to vector<4x1xf32>
    %c0_20 = arith.constant 0 : index
    %c1 = arith.constant 1 : index
    %37 = vector.load %arg18[%c0_20, %c1] : memref<24x18xf32, #tpu.memory_space<vmem>>, vector<4x1xf32>
    tpu.vector_store %arg18[%c0_20, %c1], %36 {strides = array<i32>} : memref<24x18xf32, #tpu.memory_space<vmem>>, vector<4x1xf32>,
    %c4 = arith.constant 4 : index
    %c1_21 = arith.constant 1 : index
    %38 = vector.load %arg18[%c4, %c1_21] : memref<24x18xf32, #tpu.memory_space<vmem>>, vector<4x16xf32>
    tpu.vector_store %arg18[%c4, %c1_21], %2 {strides = array<i32>} : memref<24x18xf32, #tpu.memory_space<vmem>>, vector<4x16xf32>,
    %c8 = arith.constant 8 : index
    %c1_22 = arith.constant 1 : index
    %39 = vector.load %arg18[%c8, %c1_22] : memref<24x18xf32, #tpu.memory_space<vmem>>, vector<4x16xf32>
    tpu.vector_store %arg18[%c8, %c1_22], %3 {strides = array<i32>} : memref<24x18xf32, #tpu.memory_space<vmem>>, vector<4x16xf32>,
    %c0_23 = arith.constant 0 : index
    %c1_24 = arith.constant 1 : index
    %40 = vector.load %arg18[%c0_23, %c1_24] : memref<24x18xf32, #tpu.memory_space<vmem>>, vector<12x16xf32>
    %41 = arith.truncf %40 : vector<12x16xf32> to vector<12x16xbf16>
    %cst_25 = arith.constant dense<0.000000e+00> : vector<8x16xf32>
    %42 = tpu.matmul %23, %41, %cst_25 {dimension_numbers = #tpu.dot_dimension_numbers<[1], [0], [0], [1], [0, 0, 1, 1], [], []>} : vector<8x12xbf16>, vector<12x16xbf16>, vector<8x16xf32> -> vector<8x16xf32>
    %c0_26 = arith.constant 0 : index
    %c1_27 = arith.constant 1 : index
    %43 = vector.load %arg18[%c0_26, %c1_27] : memref<24x18xf32, #tpu.memory_space<vmem>>, vector<4x16xf32>
    tpu.vector_store %arg18[%c0_26, %c1_27], %2 {strides = array<i32>} : memref<24x18xf32, #tpu.memory_space<vmem>>, vector<4x16xf32>,
    %c4_28 = arith.constant 4 : index
    %c1_29 = arith.constant 1 : index
    %44 = vector.load %arg18[%c4_28, %c1_29] : memref<24x18xf32, #tpu.memory_space<vmem>>, vector<4x16xf32>
    tpu.vector_store %arg18[%c4_28, %c1_29], %3 {strides = array<i32>} : memref<24x18xf32, #tpu.memory_space<vmem>>, vector<4x16xf32>,
    %c1_i32_30 = arith.constant 1 : i32
    %45 = vector.broadcast %c1_i32_30 : i32 to vector<1x16xi32>
    %46 = arith.cmpi sge, %22, %45 : vector<1x16xi32>
    %cst_31 = arith.constant 0.000000e+00 : f32
    %47 = vector.shape_cast %46 : vector<1x16xi1> to vector<1x16xi1>
    %48 = vector.broadcast %47 : vector<1x16xi1> to vector<4x16xi1>
    %49 = vector.broadcast %cst_31 : f32 to vector<4x16xf32>
    %50 = arith.select %48, %2, %49 : vector<4x16xi1>, vector<4x16xf32>
    %c8_32 = arith.constant 8 : index
    %c0_33 = arith.constant 0 : index
    %51 = vector.load %arg18[%c8_32, %c0_33] : memref<24x18xf32, #tpu.memory_space<vmem>>, vector<4x16xf32>
    tpu.vector_store %arg18[%c8_32, %c0_33], %50 {strides = array<i32>} : memref<24x18xf32, #tpu.memory_space<vmem>>, vector<4x16xf32>,
    %cst_34 = arith.constant 0.000000e+00 : f32
    %52 = vector.broadcast %cst_34 : f32 to vector<4x1xf32>
    %c8_35 = arith.constant 8 : index
    %c16 = arith.constant 16 : index
    %53 = vector.load %arg18[%c8_35, %c16] : memref<24x18xf32, #tpu.memory_space<vmem>>, vector<4x1xf32>
    tpu.vector_store %arg18[%c8_35, %c16], %52 {strides = array<i32>} : memref<24x18xf32, #tpu.memory_space<vmem>>, vector<4x1xf32>,
    %c0_36 = arith.constant 0 : index
    %c1_37 = arith.constant 1 : index
    %54 = vector.load %arg18[%c0_36, %c1_37] : memref<24x18xf32, #tpu.memory_space<vmem>>, vector<12x16xf32>
    %55 = arith.truncf %54 : vector<12x16xf32> to vector<12x16xbf16>
    %cst_38 = arith.constant dense<0.000000e+00> : vector<8x16xf32>
    %56 = tpu.matmul %23, %55, %cst_38 {dimension_numbers = #tpu.dot_dimension_numbers<[1], [0], [0], [1], [0, 0, 1, 1], [], []>} : vector<8x12xbf16>, vector<12x16xbf16>, vector<8x16xf32> -> vector<8x16xf32>
    %cst_39 = arith.constant dense<0.000000e+00> : vector<8xf32>
    %57 = vector.multi_reduction <add>, %42, %cst_39 [1] : vector<8x16xf32> to vector<8xf32>
    %58 = vector.shape_cast %57 : vector<8xf32> to vector<8x1xf32>
    %59 = arith.mulf %42, %42 : vector<8x16xf32>
    %cst_40 = arith.constant dense<0.000000e+00> : vector<8xf32>
    %60 = vector.multi_reduction <add>, %59, %cst_40 [1] : vector<8x16xf32> to vector<8xf32>
    %61 = vector.shape_cast %60 : vector<8xf32> to vector<8x1xf32>
    %cst_41 = arith.constant dense<0.000000e+00> : vector<8xf32>
    %62 = vector.multi_reduction <add>, %56, %cst_41 [1] : vector<8x16xf32> to vector<8xf32>
    %63 = vector.shape_cast %62 : vector<8xf32> to vector<8x1xf32>
    %64 = arith.mulf %56, %56 : vector<8x16xf32>
    %cst_42 = arith.constant dense<0.000000e+00> : vector<8xf32>
    %65 = vector.multi_reduction <add>, %64, %cst_42 [1] : vector<8x16xf32> to vector<8xf32>
    %66 = vector.shape_cast %65 : vector<8xf32> to vector<8x1xf32>
    %67 = arith.addf %58, %63 : vector<8x1xf32>
    %68 = arith.addf %61, %66 : vector<8x1xf32>
    %cst_43 = arith.constant 3.125000e-02 : f32
    %69 = vector.broadcast %cst_43 : f32 to vector<8x1xf32>
    %70 = arith.mulf %67, %69 : vector<8x1xf32>
    %cst_44 = arith.constant 3.125000e-02 : f32
    %71 = vector.broadcast %cst_44 : f32 to vector<8x1xf32>
    %72 = arith.mulf %68, %71 : vector<8x1xf32>
    %73 = arith.mulf %70, %70 : vector<8x1xf32>
    %74 = arith.subf %72, %73 : vector<8x1xf32>
    %cst_45 = arith.constant 9.99999974E-6 : f32
    %75 = vector.broadcast %cst_45 : f32 to vector<8x1xf32>
    %76 = arith.addf %74, %75 : vector<8x1xf32>
    %77 = math.rsqrt %76 : vector<8x1xf32>
    %78 = arith.mulf %24, %77 : vector<8x1xf32>
    %79 = arith.mulf %70, %78 : vector<8x1xf32>
    %80 = arith.subf %25, %79 : vector<8x1xf32>
    %81 = vector.broadcast %78 : vector<8x1xf32> to vector<8x16xf32>
    %82 = arith.mulf %42, %81 : vector<8x16xf32>
    %83 = vector.broadcast %80 : vector<8x1xf32> to vector<8x16xf32>
    %84 = arith.addf %82, %83 : vector<8x16xf32>
    %cst_46 = arith.constant 0.000000e+00 : f32
    %85 = vector.broadcast %cst_46 : f32 to vector<8x16xf32>
    %86 = arith.maximumf %84, %85 : vector<8x16xf32>
    %87 = vector.broadcast %78 : vector<8x1xf32> to vector<8x16xf32>
    %88 = arith.mulf %56, %87 : vector<8x16xf32>
    %89 = vector.broadcast %80 : vector<8x1xf32> to vector<8x16xf32>
    %90 = arith.addf %88, %89 : vector<8x16xf32>
    %cst_47 = arith.constant 0.000000e+00 : f32
    %91 = vector.broadcast %cst_47 : f32 to vector<8x16xf32>
    %92 = arith.maximumf %90, %91 : vector<8x16xf32>
    %c7_i32_48 = arith.constant 7 : i32
    %93 = vector.broadcast %c7_i32_48 : i32 to vector<1x16xi32>
    %94 = arith.cmpi slt, %22, %93 : vector<1x16xi32>
    %cst_49 = arith.constant 0.000000e+00 : f32
    %95 = vector.shape_cast %94 : vector<1x16xi1> to vector<1x16xi1>
    %96 = vector.broadcast %95 : vector<1x16xi1> to vector<8x16xi1>
    %97 = vector.broadcast %cst_49 : f32 to vector<8x16xf32>
    %98 = arith.select %96, %92, %97 : vector<8x16xi1>, vector<8x16xf32>
    %c0_50 = arith.constant 0 : index
    %c2_51 = arith.constant 2 : index
    %99 = vector.load %arg18[%c0_50, %c2_51] : memref<24x18xf32, #tpu.memory_space<vmem>>, vector<8x16xf32>
    tpu.vector_store %arg18[%c0_50, %c2_51], %98 {strides = array<i32>} : memref<24x18xf32, #tpu.memory_space<vmem>>, vector<8x16xf32>,
    %cst_52 = arith.constant 0.000000e+00 : f32
    %100 = vector.broadcast %cst_52 : f32 to vector<8x1xf32>
    %c0_53 = arith.constant 0 : index
    %c1_54 = arith.constant 1 : index
    %101 = vector.load %arg18[%c0_53, %c1_54] : memref<24x18xf32, #tpu.memory_space<vmem>>, vector<8x1xf32>
    tpu.vector_store %arg18[%c0_53, %c1_54], %100 {strides = array<i32>} : memref<24x18xf32, #tpu.memory_space<vmem>>, vector<8x1xf32>,
    %c8_55 = arith.constant 8 : index
    %c1_56 = arith.constant 1 : index
    %102 = vector.load %arg18[%c8_55, %c1_56] : memref<24x18xf32, #tpu.memory_space<vmem>>, vector<8x16xf32>
    tpu.vector_store %arg18[%c8_55, %c1_56], %86 {strides = array<i32>} : memref<24x18xf32, #tpu.memory_space<vmem>>, vector<8x16xf32>,
    %c16_57 = arith.constant 16 : index
    %c1_58 = arith.constant 1 : index
    %103 = vector.load %arg18[%c16_57, %c1_58] : memref<24x18xf32, #tpu.memory_space<vmem>>, vector<8x16xf32>
    tpu.vector_store %arg18[%c16_57, %c1_58], %92 {strides = array<i32>} : memref<24x18xf32, #tpu.memory_space<vmem>>, vector<8x16xf32>,
    %c0_59 = arith.constant 0 : index
    %c1_60 = arith.constant 1 : index
    %104 = vector.load %arg18[%c0_59, %c1_60] : memref<24x18xf32, #tpu.memory_space<vmem>>, vector<24x16xf32>
    %105 = arith.truncf %104 : vector<24x16xf32> to vector<24x16xbf16>
    %cst_61 = arith.constant dense<0.000000e+00> : vector<8x16xf32>
    %106 = tpu.matmul %26, %105, %cst_61 {dimension_numbers = #tpu.dot_dimension_numbers<[1], [0], [0], [1], [0, 0, 1, 1], [], []>} : vector<8x24xbf16>, vector<24x16xbf16>, vector<8x16xf32> -> vector<8x16xf32>
    %cst_62 = arith.constant dense<0.000000e+00> : vector<8xf32>
    %107 = vector.multi_reduction <add>, %106, %cst_62 [1] : vector<8x16xf32> to vector<8xf32>
    %108 = vector.shape_cast %107 : vector<8xf32> to vector<8x1xf32>
    %109 = arith.mulf %106, %106 : vector<8x16xf32>
    %cst_63 = arith.constant dense<0.000000e+00> : vector<8xf32>
    %110 = vector.multi_reduction <add>, %109, %cst_63 [1] : vector<8x16xf32> to vector<8xf32>
    %111 = vector.shape_cast %110 : vector<8xf32> to vector<8x1xf32>
    %cst_64 = arith.constant 6.250000e-02 : f32
    %112 = vector.broadcast %cst_64 : f32 to vector<8x1xf32>
    %113 = arith.mulf %108, %112 : vector<8x1xf32>
    %cst_65 = arith.constant 6.250000e-02 : f32
    %114 = vector.broadcast %cst_65 : f32 to vector<8x1xf32>
    %115 = arith.mulf %111, %114 : vector<8x1xf32>
    %116 = arith.mulf %113, %113 : vector<8x1xf32>
    %117 = arith.subf %115, %116 : vector<8x1xf32>
    %cst_66 = arith.constant 9.99999974E-6 : f32
    %118 = vector.broadcast %cst_66 : f32 to vector<8x1xf32>
    %119 = arith.addf %117, %118 : vector<8x1xf32>
    %120 = math.rsqrt %119 : vector<8x1xf32>
    %121 = arith.mulf %27, %120 : vector<8x1xf32>
    %122 = arith.mulf %113, %121 : vector<8x1xf32>
    %123 = arith.subf %28, %122 : vector<8x1xf32>
    %124 = vector.broadcast %121 : vector<8x1xf32> to vector<8x16xf32>
    %125 = arith.mulf %106, %124 : vector<8x16xf32>
    %126 = vector.broadcast %123 : vector<8x1xf32> to vector<8x16xf32>
    %127 = arith.addf %125, %126 : vector<8x16xf32>
    %cst_67 = arith.constant 0.000000e+00 : f32
    %128 = vector.broadcast %cst_67 : f32 to vector<4x16xf32>
    %129 = arith.addf %128, %4 : vector<4x16xf32>
    %130 = arith.addf %129, %5 : vector<4x16xf32>
    %cst_68 = arith.constant 5.000000e-01 : f32
    %131 = vector.broadcast %cst_68 : f32 to vector<4x16xf32>
    %132 = arith.mulf %130, %131 : vector<4x16xf32>
    %c0_69 = arith.constant 0 : index
    %c0_70 = arith.constant 0 : index
    %133 = vector.load %arg8[%c0_69, %c0_70] : memref<8x4xbf16, #tpu.memory_space<vmem>>, vector<8x4xbf16>
    %c0_71 = arith.constant 0 : index
    %c0_72 = arith.constant 0 : index
    %134 = vector.load %arg9[%c0_71, %c0_72] : memref<8x1xf32, #tpu.memory_space<vmem>>, vector<8x1xf32>
    %135 = arith.truncf %132 : vector<4x16xf32> to vector<4x16xbf16>
    %cst_73 = arith.constant dense<0.000000e+00> : vector<8x16xf32>
    %136 = tpu.matmul %133, %135, %cst_73 {dimension_numbers = #tpu.dot_dimension_numbers<[1], [0], [0], [1], [0, 0, 1, 1], [], []>} : vector<8x4xbf16>, vector<4x16xbf16>, vector<8x16xf32> -> vector<8x16xf32>
    %137 = vector.broadcast %134 : vector<8x1xf32> to vector<8x16xf32>
    %138 = arith.addf %136, %137 : vector<8x16xf32>
    %139 = arith.addf %127, %138 : vector<8x16xf32>
    %cst_74 = arith.constant 0.000000e+00 : f32
    %140 = vector.broadcast %cst_74 : f32 to vector<8x16xf32>
    %141 = arith.maximumf %139, %140 : vector<8x16xf32>
    %c0_75 = arith.constant 0 : index
    %c0_76 = arith.constant 0 : index
    %142 = vector.load %arg10[%c0_75, %c0_76] : memref<8x24xbf16, #tpu.memory_space<vmem>>, vector<8x24xbf16>
    %c0_77 = arith.constant 0 : index
    %c0_78 = arith.constant 0 : index
    %143 = vector.load %arg11[%c0_77, %c0_78] : memref<8x1xf32, #tpu.memory_space<vmem>>, vector<8x1xf32>
    %c0_79 = arith.constant 0 : index
    %c0_80 = arith.constant 0 : index
    %144 = vector.load %arg12[%c0_79, %c0_80] : memref<8x1xf32, #tpu.memory_space<vmem>>, vector<8x1xf32>
    %c0_81 = arith.constant 0 : index
    %c0_82 = arith.constant 0 : index
    %145 = vector.load %arg13[%c0_81, %c0_82] : memref<8x24xbf16, #tpu.memory_space<vmem>>, vector<8x24xbf16>
    %c0_83 = arith.constant 0 : index
    %c0_84 = arith.constant 0 : index
    %146 = vector.load %arg14[%c0_83, %c0_84] : memref<8x1xf32, #tpu.memory_space<vmem>>, vector<8x1xf32>
    %c0_85 = arith.constant 0 : index
    %c0_86 = arith.constant 0 : index
    %147 = vector.load %arg15[%c0_85, %c0_86] : memref<8x1xf32, #tpu.memory_space<vmem>>, vector<8x1xf32>
    %c7_i32_87 = arith.constant 7 : i32
    %148 = vector.broadcast %c7_i32_87 : i32 to vector<1x16xi32>
    %149 = arith.cmpi slt, %22, %148 : vector<1x16xi32>
    %cst_88 = arith.constant 0.000000e+00 : f32
    %150 = vector.shape_cast %149 : vector<1x16xi1> to vector<1x16xi1>
    %151 = vector.broadcast %150 : vector<1x16xi1> to vector<8x16xi1>
    %152 = vector.broadcast %cst_88 : f32 to vector<8x16xf32>
    %153 = arith.select %151, %141, %152 : vector<8x16xi1>, vector<8x16xf32>
    %c0_89 = arith.constant 0 : index
    %c2_90 = arith.constant 2 : index
    %154 = vector.load %arg18[%c0_89, %c2_90] : memref<24x18xf32, #tpu.memory_space<vmem>>, vector<8x16xf32>
    tpu.vector_store %arg18[%c0_89, %c2_90], %153 {strides = array<i32>} : memref<24x18xf32, #tpu.memory_space<vmem>>, vector<8x16xf32>,
    %cst_91 = arith.constant 0.000000e+00 : f32
    %155 = vector.broadcast %cst_91 : f32 to vector<8x1xf32>
    %c0_92 = arith.constant 0 : index
    %c1_93 = arith.constant 1 : index
    %156 = vector.load %arg18[%c0_92, %c1_93] : memref<24x18xf32, #tpu.memory_space<vmem>>, vector<8x1xf32>
    tpu.vector_store %arg18[%c0_92, %c1_93], %155 {strides = array<i32>} : memref<24x18xf32, #tpu.memory_space<vmem>>, vector<8x1xf32>,
    %c8_94 = arith.constant 8 : index
    %c1_95 = arith.constant 1 : index
    %157 = vector.load %arg18[%c8_94, %c1_95] : memref<24x18xf32, #tpu.memory_space<vmem>>, vector<8x16xf32>
    tpu.vector_store %arg18[%c8_94, %c1_95], %141 {strides = array<i32>} : memref<24x18xf32, #tpu.memory_space<vmem>>, vector<8x16xf32>,
    %c1_i32_96 = arith.constant 1 : i32
    %158 = vector.broadcast %c1_i32_96 : i32 to vector<1x16xi32>
    %159 = arith.cmpi sge, %22, %158 : vector<1x16xi32>
    %cst_97 = arith.constant 0.000000e+00 : f32
    %160 = vector.shape_cast %159 : vector<1x16xi1> to vector<1x16xi1>
    %161 = vector.broadcast %160 : vector<1x16xi1> to vector<8x16xi1>
    %162 = vector.broadcast %cst_97 : f32 to vector<8x16xf32>
    %163 = arith.select %161, %141, %162 : vector<8x16xi1>, vector<8x16xf32>
    %c16_98 = arith.constant 16 : index
    %c0_99 = arith.constant 0 : index
    %164 = vector.load %arg18[%c16_98, %c0_99] : memref<24x18xf32, #tpu.memory_space<vmem>>, vector<8x16xf32>
    tpu.vector_store %arg18[%c16_98, %c0_99], %163 {strides = array<i32>} : memref<24x18xf32, #tpu.memory_space<vmem>>, vector<8x16xf32>,
    %cst_100 = arith.constant 0.000000e+00 : f32
    %165 = vector.broadcast %cst_100 : f32 to vector<8x1xf32>
    %c16_101 = arith.constant 16 : index
    %c16_102 = arith.constant 16 : index
    %166 = vector.load %arg18[%c16_101, %c16_102] : memref<24x18xf32, #tpu.memory_space<vmem>>, vector<8x1xf32>
    tpu.vector_store %arg18[%c16_101, %c16_102], %165 {strides = array<i32>} : memref<24x18xf32, #tpu.memory_space<vmem>>, vector<8x1xf32>,
    %c0_103 = arith.constant 0 : index
    %c1_104 = arith.constant 1 : index
    %167 = vector.load %arg18[%c0_103, %c1_104] : memref<24x18xf32, #tpu.memory_space<vmem>>, vector<24x16xf32>
    %168 = arith.truncf %167 : vector<24x16xf32> to vector<24x16xbf16>
    %cst_105 = arith.constant dense<0.000000e+00> : vector<8x16xf32>
    %169 = tpu.matmul %142, %168, %cst_105 {dimension_numbers = #tpu.dot_dimension_numbers<[1], [0], [0], [1], [0, 0, 1, 1], [], []>} : vector<8x24xbf16>, vector<24x16xbf16>, vector<8x16xf32> -> vector<8x16xf32>
    %cst_106 = arith.constant dense<0.000000e+00> : vector<8xf32>
    %170 = vector.multi_reduction <add>, %169, %cst_106 [1] : vector<8x16xf32> to vector<8xf32>
    %171 = vector.shape_cast %170 : vector<8xf32> to vector<8x1xf32>
    %172 = arith.mulf %169, %169 : vector<8x16xf32>
    %cst_107 = arith.constant dense<0.000000e+00> : vector<8xf32>
    %173 = vector.multi_reduction <add>, %172, %cst_107 [1] : vector<8x16xf32> to vector<8xf32>
    %174 = vector.shape_cast %173 : vector<8xf32> to vector<8x1xf32>
    %cst_108 = arith.constant 6.250000e-02 : f32
    %175 = vector.broadcast %cst_108 : f32 to vector<8x1xf32>
    %176 = arith.mulf %171, %175 : vector<8x1xf32>
    %cst_109 = arith.constant 6.250000e-02 : f32
    %177 = vector.broadcast %cst_109 : f32 to vector<8x1xf32>
    %178 = arith.mulf %174, %177 : vector<8x1xf32>
    %179 = arith.mulf %176, %176 : vector<8x1xf32>
    %180 = arith.subf %178, %179 : vector<8x1xf32>
    %cst_110 = arith.constant 9.99999974E-6 : f32
    %181 = vector.broadcast %cst_110 : f32 to vector<8x1xf32>
    %182 = arith.addf %180, %181 : vector<8x1xf32>
    %183 = math.rsqrt %182 : vector<8x1xf32>
    %184 = arith.mulf %143, %183 : vector<8x1xf32>
    %185 = arith.mulf %176, %184 : vector<8x1xf32>
    %186 = arith.subf %144, %185 : vector<8x1xf32>
    %187 = vector.broadcast %184 : vector<8x1xf32> to vector<8x16xf32>
    %188 = arith.mulf %169, %187 : vector<8x16xf32>
    %189 = vector.broadcast %186 : vector<8x1xf32> to vector<8x16xf32>
    %190 = arith.addf %188, %189 : vector<8x16xf32>
    %cst_111 = arith.constant 0.000000e+00 : f32
    %191 = vector.broadcast %cst_111 : f32 to vector<8x16xf32>
    %192 = arith.maximumf %190, %191 : vector<8x16xf32>
    %c7_i32_112 = arith.constant 7 : i32
    %193 = vector.broadcast %c7_i32_112 : i32 to vector<1x16xi32>
    %194 = arith.cmpi slt, %22, %193 : vector<1x16xi32>
    %cst_113 = arith.constant 0.000000e+00 : f32
    %195 = vector.shape_cast %194 : vector<1x16xi1> to vector<1x16xi1>
    %196 = vector.broadcast %195 : vector<1x16xi1> to vector<8x16xi1>
    %197 = vector.broadcast %cst_113 : f32 to vector<8x16xf32>
    %198 = arith.select %196, %192, %197 : vector<8x16xi1>, vector<8x16xf32>
    %c0_114 = arith.constant 0 : index
    %c2_115 = arith.constant 2 : index
    %199 = vector.load %arg18[%c0_114, %c2_115] : memref<24x18xf32, #tpu.memory_space<vmem>>, vector<8x16xf32>
    tpu.vector_store %arg18[%c0_114, %c2_115], %198 {strides = array<i32>} : memref<24x18xf32, #tpu.memory_space<vmem>>, vector<8x16xf32>,
    %cst_116 = arith.constant 0.000000e+00 : f32
    %200 = vector.broadcast %cst_116 : f32 to vector<8x1xf32>
    %c0_117 = arith.constant 0 : index
    %c1_118 = arith.constant 1 : index
    %201 = vector.load %arg18[%c0_117, %c1_118] : memref<24x18xf32, #tpu.memory_space<vmem>>, vector<8x1xf32>
    tpu.vector_store %arg18[%c0_117, %c1_118], %200 {strides = array<i32>} : memref<24x18xf32, #tpu.memory_space<vmem>>, vector<8x1xf32>,
    %c8_119 = arith.constant 8 : index
    %c1_120 = arith.constant 1 : index
    %202 = vector.load %arg18[%c8_119, %c1_120] : memref<24x18xf32, #tpu.memory_space<vmem>>, vector<8x16xf32>
    tpu.vector_store %arg18[%c8_119, %c1_120], %192 {strides = array<i32>} : memref<24x18xf32, #tpu.memory_space<vmem>>, vector<8x16xf32>,
    %c1_i32_121 = arith.constant 1 : i32
    %203 = vector.broadcast %c1_i32_121 : i32 to vector<1x16xi32>
    %204 = arith.cmpi sge, %22, %203 : vector<1x16xi32>
    %cst_122 = arith.constant 0.000000e+00 : f32
    %205 = vector.shape_cast %204 : vector<1x16xi1> to vector<1x16xi1>
    %206 = vector.broadcast %205 : vector<1x16xi1> to vector<8x16xi1>
    %207 = vector.broadcast %cst_122 : f32 to vector<8x16xf32>
    %208 = arith.select %206, %192, %207 : vector<8x16xi1>, vector<8x16xf32>
    %c16_123 = arith.constant 16 : index
    %c0_124 = arith.constant 0 : index
    %209 = vector.load %arg18[%c16_123, %c0_124] : memref<24x18xf32, #tpu.memory_space<vmem>>, vector<8x16xf32>
    tpu.vector_store %arg18[%c16_123, %c0_124], %208 {strides = array<i32>} : memref<24x18xf32, #tpu.memory_space<vmem>>, vector<8x16xf32>,
    %cst_125 = arith.constant 0.000000e+00 : f32
    %210 = vector.broadcast %cst_125 : f32 to vector<8x1xf32>
    %c16_126 = arith.constant 16 : index
    %c16_127 = arith.constant 16 : index
    %211 = vector.load %arg18[%c16_126, %c16_127] : memref<24x18xf32, #tpu.memory_space<vmem>>, vector<8x1xf32>
    tpu.vector_store %arg18[%c16_126, %c16_127], %210 {strides = array<i32>} : memref<24x18xf32, #tpu.memory_space<vmem>>, vector<8x1xf32>,
    %c0_128 = arith.constant 0 : index
    %c1_129 = arith.constant 1 : index
    %212 = vector.load %arg18[%c0_128, %c1_129] : memref<24x18xf32, #tpu.memory_space<vmem>>, vector<24x16xf32>
    %213 = arith.truncf %212 : vector<24x16xf32> to vector<24x16xbf16>
    %cst_130 = arith.constant dense<0.000000e+00> : vector<8x16xf32>
    %214 = tpu.matmul %145, %213, %cst_130 {dimension_numbers = #tpu.dot_dimension_numbers<[1], [0], [0], [1], [0, 0, 1, 1], [], []>} : vector<8x24xbf16>, vector<24x16xbf16>, vector<8x16xf32> -> vector<8x16xf32>
    %cst_131 = arith.constant dense<0.000000e+00> : vector<8xf32>
    %215 = vector.multi_reduction <add>, %214, %cst_131 [1] : vector<8x16xf32> to vector<8xf32>
    %216 = vector.shape_cast %215 : vector<8xf32> to vector<8x1xf32>
    %217 = arith.mulf %214, %214 : vector<8x16xf32>
    %cst_132 = arith.constant dense<0.000000e+00> : vector<8xf32>
    %218 = vector.multi_reduction <add>, %217, %cst_132 [1] : vector<8x16xf32> to vector<8xf32>
    %219 = vector.shape_cast %218 : vector<8xf32> to vector<8x1xf32>
    %cst_133 = arith.constant 6.250000e-02 : f32
    %220 = vector.broadcast %cst_133 : f32 to vector<8x1xf32>
    %221 = arith.mulf %216, %220 : vector<8x1xf32>
    %cst_134 = arith.constant 6.250000e-02 : f32
    %222 = vector.broadcast %cst_134 : f32 to vector<8x1xf32>
    %223 = arith.mulf %219, %222 : vector<8x1xf32>
    %224 = arith.mulf %221, %221 : vector<8x1xf32>
    %225 = arith.subf %223, %224 : vector<8x1xf32>
    %cst_135 = arith.constant 9.99999974E-6 : f32
    %226 = vector.broadcast %cst_135 : f32 to vector<8x1xf32>
    %227 = arith.addf %225, %226 : vector<8x1xf32>
    %228 = math.rsqrt %227 : vector<8x1xf32>
    %229 = arith.mulf %146, %228 : vector<8x1xf32>
    %230 = arith.mulf %221, %229 : vector<8x1xf32>
    %231 = arith.subf %147, %230 : vector<8x1xf32>
    %232 = vector.broadcast %229 : vector<8x1xf32> to vector<8x16xf32>
    %233 = arith.mulf %214, %232 : vector<8x16xf32>
    %234 = vector.broadcast %231 : vector<8x1xf32> to vector<8x16xf32>
    %235 = arith.addf %233, %234 : vector<8x16xf32>
    %236 = arith.addf %235, %139 : vector<8x16xf32>
    %cst_136 = arith.constant 0.000000e+00 : f32
    %237 = vector.broadcast %cst_136 : f32 to vector<8x16xf32>
    %238 = arith.maximumf %236, %237 : vector<8x16xf32>
    %c0_137 = arith.constant 0 : index
    %c0_138 = arith.constant 0 : index
    %239 = vector.load %arg16[%c0_137, %c0_138] : memref<8x16xf32, #tpu.memory_space<vmem>>, vector<8x16xf32>
    tpu.vector_store %arg16[%c0_137, %c0_138], %238 {strides = array<i32>} : memref<8x16xf32, #tpu.memory_space<vmem>>, vector<8x16xf32>,
    %c0_139 = arith.constant 0 : index
    %c0_140 = arith.constant 0 : index
    %240 = vector.load %arg17[%c0_139, %c0_140] : memref<8x16xf32, #tpu.memory_space<vmem>>, vector<8x16xf32>
    tpu.vector_store %arg17[%c0_139, %c0_140], %236 {strides = array<i32>} : memref<8x16xf32, #tpu.memory_space<vmem>>, vector<8x16xf32>,
    return
  }
}

</mosaic_0001>

<llo_original>
// kernel: tpu_custom_call.1
$region0: #{tpu_custom_call.1}
  #allocation0 [shape = 'u32[]', space=smem, size = 0x4, offset = 0x4, fixed_abs, tag = 'smem constant byte address 0x4 - core index']
  #allocation1 [shape = 'u32[144,128]{1,0:T(1,128)}', space=vmem, size = 0x12000, scoped, tag = 'internal scratch']
  #allocation2 [shape = 'f32[24,18]{1,0:T(8,128)}', space=vmem, size = 0x3000, scoped, tag = 'scratch operand']
  %s0 = inlined_call_operand.vmem [shape: f32[8,16], index: 0, kind: input, shape index: {}]
  %s1 = inlined_call_operand.vmem [shape: f32[8,16], index: 1, kind: input, shape index: {}]
  %s2 = inlined_call_operand.vmem [shape: bf16[8,12], index: 2, kind: input, shape index: {}]
  %s3 = inlined_call_operand.vmem [shape: f32[8,1], index: 3, kind: input, shape index: {}]
  %s4 = inlined_call_operand.vmem [shape: f32[8,1], index: 4, kind: input, shape index: {}]
  %s5 = inlined_call_operand.vmem [shape: bf16[8,24], index: 5, kind: input, shape index: {}]
  %s6 = inlined_call_operand.vmem [shape: f32[8,1], index: 6, kind: input, shape index: {}]
  %s7 = inlined_call_operand.vmem [shape: f32[8,1], index: 7, kind: input, shape index: {}]
  %s8 = inlined_call_operand.vmem [shape: bf16[8,4], index: 8, kind: input, shape index: {}]
  %s9 = inlined_call_operand.vmem [shape: f32[8,1], index: 9, kind: input, shape index: {}]
  %s10 = inlined_call_operand.vmem [shape: bf16[8,24], index: 10, kind: input, shape index: {}]
  %s11 = inlined_call_operand.vmem [shape: f32[8,1], index: 11, kind: input, shape index: {}]
  %s12 = inlined_call_operand.vmem [shape: f32[8,1], index: 12, kind: input, shape index: {}]
  %s13 = inlined_call_operand.vmem [shape: bf16[8,24], index: 13, kind: input, shape index: {}]
  %s14 = inlined_call_operand.vmem [shape: f32[8,1], index: 14, kind: input, shape index: {}]
  %s15 = inlined_call_operand.vmem [shape: f32[8,1], index: 15, kind: input, shape index: {}]
  %s16 = inlined_call_operand.hbm [shape: f32[8,16], index: 16, kind: output, shape index: {0}]
  %s17 = inlined_call_operand.hbm [shape: f32[8,16], index: 17, kind: output, shape index: {1}]
  %18 = xla_tuple %s16, %s17
  %s19 = sld [smem:[#allocation0]]
  $region82: #{tpu_custom_call.1} parent=0
    _
  %s21 = ssub.s32 1, %s19
  %s22 = scalar_select 0, %s21, %s19
  $region1: #{tpu_custom_call.1} parent=0
    #allocation3 [shape = 'u8[4096]{0}', space=vmem, size = 0x1000, scoped, tag = 'output window, operand 0, single buffered']
    #allocation4 [shape = 's32[1]{0}', space=sflag, size = 0x4, scoped, tag = 'scoped memory for tpu_custom_call.1']
    #allocation5 [shape = 'u8[4096]{0}', space=vmem, size = 0x1000, scoped, tag = 'output window, operand 1, single buffered']
    #allocation6 [shape = 's32[1]{0}', space=sflag, size = 0x4, scoped, tag = 'scoped memory for tpu_custom_call.1']
    %23 = vsyncpa [#allocation4], 0
    %24 = vsyncpa [#allocation6], 0
    // Predicated region
    $region2: #{tpu_custom_call.1} parent=1 // pred_check
      _
    $region3: #{tpu_custom_call.1} parent=1 // pred_check_branch
      %26 = sbr.rel (0) target = $region5
    $region4: #{tpu_custom_call.1} parent=1 // pred_region
      _
    $region5: #{tpu_custom_call.1} parent=1 // pred_fallthru
      _
    // Predicated region
    $region6: #{tpu_custom_call.1} parent=1 // pred_check
      _
    $region7: #{tpu_custom_call.1} parent=1 // pred_check_branch
      %28 = sbr.rel (0) target = $region9
    $region8: #{tpu_custom_call.1} parent=1 // pred_region
      _
    $region9: #{tpu_custom_call.1} parent=1 // pred_fallthru
      _
    // Predicated region
    $region10: #{tpu_custom_call.1} parent=1 // pred_check
      _
    $region11: #{tpu_custom_call.1} parent=1 // pred_check_branch
      %30 = sbr.rel (0) target = $region13
    $region12: #{tpu_custom_call.1} parent=1 // pred_region
      _
    $region13: #{tpu_custom_call.1} parent=1 // pred_fallthru
      _
    // Predicated region
    $region14: #{tpu_custom_call.1} parent=1 // pred_check
      _
    $region15: #{tpu_custom_call.1} parent=1 // pred_check_branch
      %32 = sbr.rel (0) target = $region17
    $region16: #{tpu_custom_call.1} parent=1 // pred_region
      _
    $region17: #{tpu_custom_call.1} parent=1 // pred_fallthru
      _
    // Predicated region
    $region18: #{tpu_custom_call.1} parent=1 // pred_check
      _
    $region19: #{tpu_custom_call.1} parent=1 // pred_check_branch
      %34 = sbr.rel (0) target = $region21
    $region20: #{tpu_custom_call.1} parent=1 // pred_region
      _
    $region21: #{tpu_custom_call.1} parent=1 // pred_fallthru
      _
    // Predicated region
    $region22: #{tpu_custom_call.1} parent=1 // pred_check
      _
    $region23: #{tpu_custom_call.1} parent=1 // pred_check_branch
      %36 = sbr.rel (0) target = $region25
    $region24: #{tpu_custom_call.1} parent=1 // pred_region
      _
    $region25: #{tpu_custom_call.1} parent=1 // pred_fallthru
      _
    // Predicated region
    $region26: #{tpu_custom_call.1} parent=1 // pred_check
      _
    $region27: #{tpu_custom_call.1} parent=1 // pred_check_branch
      %38 = sbr.rel (0) target = $region29
    $region28: #{tpu_custom_call.1} parent=1 // pred_region
      _
    $region29: #{tpu_custom_call.1} parent=1 // pred_fallthru
      _
    // Predicated region
    $region30: #{tpu_custom_call.1} parent=1 // pred_check
      _
    $region31: #{tpu_custom_call.1} parent=1 // pred_check_branch
      %40 = sbr.rel (0) target = $region33
    $region32: #{tpu_custom_call.1} parent=1 // pred_region
      _
    $region33: #{tpu_custom_call.1} parent=1 // pred_fallthru
      _
    // Predicated region
    $region34: #{tpu_custom_call.1} parent=1 // pred_check
      _
    $region35: #{tpu_custom_call.1} parent=1 // pred_check_branch
      %42 = sbr.rel (0) target = $region37
    $region36: #{tpu_custom_call.1} parent=1 // pred_region
      _
    $region37: #{tpu_custom_call.1} parent=1 // pred_fallthru
      _
    // Predicated region
    $region38: #{tpu_custom_call.1} parent=1 // pred_check
      _
    $region39: #{tpu_custom_call.1} parent=1 // pred_check_branch
      %44 = sbr.rel (0) target = $region41
    $region40: #{tpu_custom_call.1} parent=1 // pred_region
      _
    $region41: #{tpu_custom_call.1} parent=1 // pred_fallthru
      _
    // Predicated region
    $region42: #{tpu_custom_call.1} parent=1 // pred_check
      _
    $region43: #{tpu_custom_call.1} parent=1 // pred_check_branch
      %46 = sbr.rel (0) target = $region45
    $region44: #{tpu_custom_call.1} parent=1 // pred_region
      _
    $region45: #{tpu_custom_call.1} parent=1 // pred_fallthru
      _
    // Predicated region
    $region46: #{tpu_custom_call.1} parent=1 // pred_check
      _
    $region47: #{tpu_custom_call.1} parent=1 // pred_check_branch
      %48 = sbr.rel (0) target = $region49
    $region48: #{tpu_custom_call.1} parent=1 // pred_region
      _
    $region49: #{tpu_custom_call.1} parent=1 // pred_fallthru
      _
    // Predicated region
    $region50: #{tpu_custom_call.1} parent=1 // pred_check
      _
    $region51: #{tpu_custom_call.1} parent=1 // pred_check_branch
      %50 = sbr.rel (0) target = $region53
    $region52: #{tpu_custom_call.1} parent=1 // pred_region
      _
    $region53: #{tpu_custom_call.1} parent=1 // pred_fallthru
      _
    // Predicated region
    $region54: #{tpu_custom_call.1} parent=1 // pred_check
      _
    $region55: #{tpu_custom_call.1} parent=1 // pred_check_branch
      %52 = sbr.rel (0) target = $region57
    $region56: #{tpu_custom_call.1} parent=1 // pred_region
      _
    $region57: #{tpu_custom_call.1} parent=1 // pred_fallthru
      _
    // Predicated region
    $region58: #{tpu_custom_call.1} parent=1 // pred_check
      _
    $region59: #{tpu_custom_call.1} parent=1 // pred_check_branch
      %54 = sbr.rel (0) target = $region61
    $region60: #{tpu_custom_call.1} parent=1 // pred_region
      _
    $region61: #{tpu_custom_call.1} parent=1 // pred_fallthru
      _
    // Predicated region
    $region62: #{tpu_custom_call.1} parent=1 // pred_check
      _
    $region63: #{tpu_custom_call.1} parent=1 // pred_check_branch
      %56 = sbr.rel (0) target = $region65
    $region64: #{tpu_custom_call.1} parent=1 // pred_region
      _
    $region65: #{tpu_custom_call.1} parent=1 // pred_fallthru
      _
    %v58 = vld [vmem:[%s0] sm:$0xff]
    %v59 = vld [vmem:[%s1] sm:$0xff]
    %v60 = vlaneseq
    %v61 = vand.u32 %v60, 127
    %vm62 = vcmp.lt.s32.totalorder %v61, 0
    %v63 = vsub.s32 0, %v61
    %v64 = vsel %vm62, %v63, %v61
    %v65 = vshrl.u32 %v64, 3
    %v66 = vand.u32 %v64, 7
    %v67 = vsub.s32 0, %v66
    %v68 = vsel %vm62, %v67, %v66
    %vm69 = vcmp.ne.s32.totalorder %v68, 0
    %vm70 = vcmp.lt.s32.totalorder %v68, 0
    %vm71 = vmand %vm70, %vm69
    %v72 = vadd.s32 %v68, 8
    %v73 = vsel %vm71, %v72, %v68
    %v74 = vld [vmem:[%s2] sm:$0xf]
    %v75 = vld [vmem:[%s3] sm:$0xff]
    %v76 = vld [vmem:[%s4] sm:$0xff]
    %v77 = vld [vmem:[%s5] sm:$0xf]
    %v78 = vld [vmem:[%s6] sm:$0xff]
    %v79 = vld [vmem:[%s7] sm:$0xff]
    %vm80 = vcmp.lt.s32.totalorder %v73, 7
    %v81 = vsel %vm80, 1, 0
    %vm82 = vcmp.eq.s32.totalorder %v81, 1
    %v83 = vsel %vm82, %v58, 0.0
    %85 = vrot.lane.b32.xlu0 %v83, 2
    %v86 = vpop.permute.xlu0 %85
    %vm88 = vcmask 146452
    %89 = vst.msk [vmem:[#allocation2 - $0x4] sm:$0xf0] %vm88, %v86
    %vm90 = vcmask 11272
    %91 = vst.msk [vmem:[#allocation2] sm:$0xf] %vm90, 0.0
    %93 = vrot.lane.b32.xlu0 %v58, 1
    %v94 = vpop.permute.xlu0 %93
    %vm96 = vcmask 134152
    %97 = vst.msk [vmem:[#allocation2 + $0x4] sm:$0xf] %vm96, %v94
    %vm98 = vcmask 138252
    %99 = vst.msk [vmem:[#allocation2 + $0x4] sm:$0xf0] %vm98, %v94
    %v100 = vld [vmem:[#allocation2] sm:$0xff]
    %v101 = vld [vmem:[#allocation2 + $0x8] sm:$0xf]
    %v102 = vpack.c.bf16 %v101, %v100
    %104 = vrot.lane.b32.xlu0 %v102, 127
    %v105 = vpop.permute.xlu0 %104
    %vm106 = vcmask 97280
    %v108 = vsel %vm106, %v74, 0
    %vm110 = vcmask 1045504
    %v112 = vsel %vm110, %v105, 0
    %114 = vmatprep.subr.bf16.mxu0 0
    %115 = vmatpush1.bf16.msra.mxu0 %v112
    %116 = vmatprep.subr.bf16.mxu0 0
    %117 = vmatpush1.bf16.msra.mxu0 0
    %118 = vmatprep.subr.bf16.mxu0 0
    %119 = vmatpush1.bf16.msra.mxu0 0
    %120 = vmatprep.subr.bf16.mxu0 0
    %121 = vmatpush1.bf16.msra.mxu0 0
    %122 = vmatprep.subr.bf16.mxu0 0
    %123 = vmatpush1.bf16.msra.mxu0 0
    %124 = vmatprep.subr.bf16.mxu0 0
    %125 = vmatpush1.bf16.msra.mxu0 0
    %126 = vmatprep.subr.bf16.mxu0 0
    %127 = vmatpush1.bf16.msra.mxu0 0
    %128 = vmatprep.subr.bf16.mxu0 0
    %129 = vmatpush1.bf16.msra.mxu0 0
    %130 = vmatprep.subr.bf16.mxu0 0
    %131 = vmatpush1.bf16.msra.mxu0 0
    %132 = vmatprep.subr.bf16.mxu0 0
    %133 = vmatpush1.bf16.msra.mxu0 0
    %134 = vmatprep.subr.bf16.mxu0 0
    %135 = vmatpush1.bf16.msra.mxu0 0
    %136 = vmatprep.subr.bf16.mxu0 0
    %137 = vmatpush1.bf16.msra.mxu0 0
    %138 = vmatprep.subr.bf16.mxu0 0
    %139 = vmatpush1.bf16.msra.mxu0 0
    %140 = vmatprep.subr.bf16.mxu0 0
    %141 = vmatpush1.bf16.msra.mxu0 0
    %142 = vmatprep.subr.bf16.mxu0 0
    %143 = vmatpush1.bf16.msra.mxu0 0
    %144 = vmatprep.subr.bf16.mxu0 0
    %145 = vmatpush1.bf16.msra.mxu0 0
    %146 = vmatprep.mubr.bf16.mxu0 0
    %147 = vmatmul.mubr.bf16.gmra.mrb[0].mxu0 %v108
    %v148 = vpop.f32.mrb[0].mxu0
    %v149 = vadd.f32 0.0, %v148
    %v150 = vpop.f32.mrb[0].mxu0
    %v151 = vpop.f32.mrb[0].mxu0
    %v152 = vpop.f32.mrb[0].mxu0
    %153 = vdwg.mxu0
    %154 = vst.msk [vmem:[#allocation2] sm:$0xf] %vm96, %v94
    %155 = vst.msk [vmem:[#allocation2] sm:$0xf0] %vm98, %v94
    %vm156 = vcmp.ge.s32.totalorder %v73, 1
    %v157 = vsel %vm156, 1, 0
    %vm158 = vcmp.eq.s32.totalorder %v157, 1
    %v159 = vsel %vm158, %v58, 0.0
    %vm160 = vcmask 125952
    %161 = vst.msk [vmem:[#allocation2 + $0x8] sm:$0xf] %vm160, %v159
    %vm162 = vcmask 134272
    %163 = vst.msk [vmem:[#allocation2 + $0x8] sm:$0xf] %vm162, 0.0
    %v164 = vld [vmem:[#allocation2] sm:$0xff]
    %v165 = vld [vmem:[#allocation2 + $0x8] sm:$0xf]
    %v166 = vpack.c.bf16 %v165, %v164
    %168 = vrot.lane.b32.xlu0 %v166, 127
    %v169 = vpop.permute.xlu0 %168
    %v171 = vsel %vm110, %v169, 0
    %173 = vmatprep.subr.bf16.mxu0 0
    %174 = vmatpush1.bf16.msra.mxu0 %v171
    %175 = vmatprep.subr.bf16.mxu0 0
    %176 = vmatpush1.bf16.msra.mxu0 0
    %177 = vmatprep.subr.bf16.mxu0 0
    %178 = vmatpush1.bf16.msra.mxu0 0
    %179 = vmatprep.subr.bf16.mxu0 0
    %180 = vmatpush1.bf16.msra.mxu0 0
    %181 = vmatprep.subr.bf16.mxu0 0
    %182 = vmatpush1.bf16.msra.mxu0 0
    %183 = vmatprep.subr.bf16.mxu0 0
    %184 = vmatpush1.bf16.msra.mxu0 0
    %185 = vmatprep.subr.bf16.mxu0 0
    %186 = vmatpush1.bf16.msra.mxu0 0
    %187 = vmatprep.subr.bf16.mxu0 0
    %188 = vmatpush1.bf16.msra.mxu0 0
    %189 = vmatprep.subr.bf16.mxu0 0
    %190 = vmatpush1.bf16.msra.mxu0 0
    %191 = vmatprep.subr.bf16.mxu0 0
    %192 = vmatpush1.bf16.msra.mxu0 0
    %193 = vmatprep.subr.bf16.mxu0 0
    %194 = vmatpush1.bf16.msra.mxu0 0
    %195 = vmatprep.subr.bf16.mxu0 0
    %196 = vmatpush1.bf16.msra.mxu0 0
    %197 = vmatprep.subr.bf16.mxu0 0
    %198 = vmatpush1.bf16.msra.mxu0 0
    %199 = vmatprep.subr.bf16.mxu0 0
    %200 = vmatpush1.bf16.msra.mxu0 0
    %201 = vmatprep.subr.bf16.mxu0 0
    %202 = vmatpush1.bf16.msra.mxu0 0
    %203 = vmatprep.subr.bf16.mxu0 0
    %204 = vmatpush1.bf16.msra.mxu0 0
    %205 = vmatprep.mubr.bf16.mxu0 0
    %206 = vmatmul.mubr.bf16.gmra.mrb[0].mxu0 %v108
    %v207 = vpop.f32.mrb[0].mxu0
    %v208 = vadd.f32 0.0, %v207
    %v209 = vpop.f32.mrb[0].mxu0
    %v210 = vpop.f32.mrb[0].mxu0
    %v211 = vpop.f32.mrb[0].mxu0
    %212 = vdwg.mxu0
    %vm213 = vcmask 130048
    %v214 = vsel %vm213, %v149, 0.0
    %215 = vadd.xlane.f32.xlu0 %v214
    %v216 = vpop.xlane.xlu0 %215
    %v217 = vmul.f32 %v149, %v149
    %v218 = vsel %vm213, %v217, 0.0
    %219 = vadd.xlane.f32.xlu0 %v218
    %v220 = vpop.xlane.xlu0 %219
    %v221 = vsel %vm213, %v208, 0.0
    %222 = vadd.xlane.f32.xlu0 %v221
    %v223 = vpop.xlane.xlu0 %222
    %v224 = vmul.f32 %v208, %v208
    %v225 = vsel %vm213, %v224, 0.0
    %226 = vadd.xlane.f32.xlu0 %v225
    %v227 = vpop.xlane.xlu0 %226
    %v228 = vadd.f32 %v216, %v223
    %v229 = vadd.f32 %v220, %v227
    %v230 = vmul.f32 %v228, 0.03125
    %v231 = vmul.f32 %v229, 0.03125
    %v232 = vmul.f32 %v230, %v230
    %v233 = vsub.f32 %v231, %v232
    %v234 = vadd.f32 %v233, 1e-05
    %v235 = vrsqrt.pop %v234
    %v236 = vmul.f32 %v75, %v235
    %v237 = vmul.f32 %v230, %v236
    %v238 = vsub.f32 %v76, %v237
    %240 = vset.pattern.permute.xlu0 0
    %241 = vperm.xlu0 %240, %v236
    %v242 = vpop.permute.xlu0 %241
    %v244 = vmul.f32 %v149, %v242
    %246 = vset.pattern.permute.xlu0 0
    %247 = vperm.xlu0 %246, %v238
    %v248 = vpop.permute.xlu0 %247
    %v250 = vadd.f32 %v244, %v248
    %v251 = vmax.f32 %v250, 0.0
    %v252 = vmul.f32 %v208, %v242
    %v253 = vadd.f32 %v252, %v248
    %v254 = vmax.f32 %v253, 0.0
    %v255 = vsel %vm82, %v254, 0.0
    %257 = vrot.lane.b32.xlu0 %v255, 2
    %v258 = vpop.permute.xlu0 %257
    %vm260 = vcmask 146448
    %261 = vst.msk [vmem:[#allocation2] sm:$0xff] %vm260, %v258
    %vm262 = vcmask 15368
    %263 = vst.msk [vmem:[#allocation2] sm:$0xff] %vm262, 0.0
    %265 = vrot.lane.b32.xlu0 %v251, 1
    %v266 = vpop.permute.xlu0 %265
    %vm268 = vcmask 138248
    %269 = vst.msk [vmem:[#allocation2 + $0x8] sm:$0xff] %vm268, %v266
    %271 = vrot.lane.b32.xlu0 %v254, 1
    %v272 = vpop.permute.xlu0 %271
    %274 = vst.msk [vmem:[#allocation2 + $0x10] sm:$0xff] %vm268, %v272
    %v275 = vld [vmem:[#allocation2] sm:$0xff]
    %v276 = vld [vmem:[#allocation2 + $0x8] sm:$0xff]
    %v277 = vld [vmem:[#allocation2 + $0x10] sm:$0xff]
    %v278 = vpack.c.bf16 %v276, %v275
    %v279 = vpack.c.bf16 %v277, %v277
    %282 = vrot.lane.b32.xlu0 %v278, 127
    %v283 = vpop.permute.xlu0 %282
    %284 = vrot.lane.b32.xlu0 %v279, 127
    %v285 = vpop.permute.xlu0 %284
    %vm287 = vcmask 195584
    %v289 = vsel %vm287, %v77, 0
    %vm291 = vcmask 1043456
    %v293 = vsel %vm291, %v285, 0
    %295 = vmatprep.subr.bf16.mxu0 0
    %296 = vmatpush1.bf16.msra.mxu0 %v283
    %297 = vmatprep.subr.bf16.mxu0 0
    %298 = vmatpush1.bf16.msra.mxu0 %v293
    %299 = vmatprep.subr.bf16.mxu0 0
    %300 = vmatpush1.bf16.msra.mxu0 0
    %301 = vmatprep.subr.bf16.mxu0 0
    %302 = vmatpush1.bf16.msra.mxu0 0
    %303 = vmatprep.subr.bf16.mxu0 0
    %304 = vmatpush1.bf16.msra.mxu0 0
    %305 = vmatprep.subr.bf16.mxu0 0
    %306 = vmatpush1.bf16.msra.mxu0 0
    %307 = vmatprep.subr.bf16.mxu0 0
    %308 = vmatpush1.bf16.msra.mxu0 0
    %309 = vmatprep.subr.bf16.mxu0 0
    %310 = vmatpush1.bf16.msra.mxu0 0
    %311 = vmatprep.subr.bf16.mxu0 0
    %312 = vmatpush1.bf16.msra.mxu0 0
    %313 = vmatprep.subr.bf16.mxu0 0
    %314 = vmatpush1.bf16.msra.mxu0 0
    %315 = vmatprep.subr.bf16.mxu0 0
    %316 = vmatpush1.bf16.msra.mxu0 0
    %317 = vmatprep.subr.bf16.mxu0 0
    %318 = vmatpush1.bf16.msra.mxu0 0
    %319 = vmatprep.subr.bf16.mxu0 0
    %320 = vmatpush1.bf16.msra.mxu0 0
    %321 = vmatprep.subr.bf16.mxu0 0
    %322 = vmatpush1.bf16.msra.mxu0 0
    %323 = vmatprep.subr.bf16.mxu0 0
    %324 = vmatpush1.bf16.msra.mxu0 0
    %325 = vmatprep.subr.bf16.mxu0 0
    %326 = vmatpush1.bf16.msra.mxu0 0
    %327 = vmatprep.mubr.bf16.mxu0 0
    %328 = vmatmul.mubr.bf16.gmra.mrb[0].mxu0 %v289
    %v329 = vpop.f32.mrb[0].mxu0
    %v330 = vadd.f32 0.0, %v329
    %v331 = vpop.f32.mrb[0].mxu0
    %v332 = vpop.f32.mrb[0].mxu0
    %v333 = vpop.f32.mrb[0].mxu0
    %334 = vdwg.mxu0
    %v335 = vsel %vm213, %v330, 0.0
    %336 = vadd.xlane.f32.xlu0 %v335
    %v337 = vpop.xlane.xlu0 %336
    %v338 = vmul.f32 %v330, %v330
    %v339 = vsel %vm213, %v338, 0.0
    %340 = vadd.xlane.f32.xlu0 %v339
    %v341 = vpop.xlane.xlu0 %340
    %v342 = vmul.f32 %v337, 0.0625
    %v343 = vmul.f32 %v341, 0.0625
    %v344 = vmul.f32 %v342, %v342
    %v345 = vsub.f32 %v343, %v344
    %v346 = vadd.f32 %v345, 1e-05
    %v347 = vrsqrt.pop %v346
    %v348 = vmul.f32 %v78, %v347
    %v349 = vmul.f32 %v342, %v348
    %v350 = vsub.f32 %v79, %v349
    %352 = vset.pattern.permute.xlu0 0
    %353 = vperm.xlu0 %352, %v348
    %v354 = vpop.permute.xlu0 %353
    %v356 = vmul.f32 %v330, %v354
    %358 = vset.pattern.permute.xlu0 0
    %359 = vperm.xlu0 %358, %v350
    %v360 = vpop.permute.xlu0 %359
    %v362 = vadd.f32 %v356, %v360
    %v363 = vadd.f32 %v59, 0.0
    %v365 = vrot.slane %v59, 4
    %v367 = vadd.f32 %v363, %v365
    %v368 = vmul.f32 %v367, 0.5
    %v369 = vld [vmem:[%s8] sm:$0xf]
    %v370 = vld [vmem:[%s9] sm:$0xff]
    %v371 = vpack.c.bf16 %v368, %v368
    %373 = vset.pattern.permute.xlu0 0
    %374 = vperm.xlu0 %373, %v370
    %v375 = vpop.permute.xlu0 %374
    %vm377 = vcmask 31744
    %v379 = vsel %vm377, %v369, 0
    %vm381 = vcmask 1041408
    %v383 = vsel %vm381, %v371, 0
    %385 = vmatprep.subr.bf16.mxu0 0
    %386 = vmatpush1.bf16.msra.mxu0 %v383
    %387 = vmatprep.subr.bf16.mxu0 0
    %388 = vmatpush1.bf16.msra.mxu0 0
    %389 = vmatprep.subr.bf16.mxu0 0
    %390 = vmatpush1.bf16.msra.mxu0 0
    %391 = vmatprep.subr.bf16.mxu0 0
    %392 = vmatpush1.bf16.msra.mxu0 0
    %393 = vmatprep.subr.bf16.mxu0 0
    %394 = vmatpush1.bf16.msra.mxu0 0
    %395 = vmatprep.subr.bf16.mxu0 0
    %396 = vmatpush1.bf16.msra.mxu0 0
    %397 = vmatprep.subr.bf16.mxu0 0
    %398 = vmatpush1.bf16.msra.mxu0 0
    %399 = vmatprep.subr.bf16.mxu0 0
    %400 = vmatpush1.bf16.msra.mxu0 0
    %401 = vmatprep.subr.bf16.mxu0 0
    %402 = vmatpush1.bf16.msra.mxu0 0
    %403 = vmatprep.subr.bf16.mxu0 0
    %404 = vmatpush1.bf16.msra.mxu0 0
    %405 = vmatprep.subr.bf16.mxu0 0
    %406 = vmatpush1.bf16.msra.mxu0 0
    %407 = vmatprep.subr.bf16.mxu0 0
    %408 = vmatpush1.bf16.msra.mxu0 0
    %409 = vmatprep.subr.bf16.mxu0 0
    %410 = vmatpush1.bf16.msra.mxu0 0
    %411 = vmatprep.subr.bf16.mxu0 0
    %412 = vmatpush1.bf16.msra.mxu0 0
    %413 = vmatprep.subr.bf16.mxu0 0
    %414 = vmatpush1.bf16.msra.mxu0 0
    %415 = vmatprep.subr.bf16.mxu0 0
    %416 = vmatpush1.bf16.msra.mxu0 0
    %417 = vmatprep.mubr.bf16.mxu0 0
    %418 = vmatmul.mubr.bf16.gmra.mrb[0].mxu0 %v379
    %v419 = vpop.f32.mrb[0].mxu0
    %v420 = vadd.f32 %v375, %v419
    %v421 = vpop.f32.mrb[0].mxu0
    %v422 = vpop.f32.mrb[0].mxu0
    %v423 = vpop.f32.mrb[0].mxu0
    %424 = vdwg.mxu0
    %v425 = vadd.f32 %v362, %v420
    %v426 = vmax.f32 %v425, 0.0
    %v427 = vld [vmem:[%s10] sm:$0xf]
    %v428 = vld [vmem:[%s11] sm:$0xff]
    %v429 = vld [vmem:[%s12] sm:$0xff]
    %v430 = vld [vmem:[%s13] sm:$0xf]
    %v431 = vld [vmem:[%s14] sm:$0xff]
    %v432 = vld [vmem:[%s15] sm:$0xff]
    %v433 = vsel %vm82, %v426, 0.0
    %435 = vrot.lane.b32.xlu0 %v433, 2
    %v436 = vpop.permute.xlu0 %435
    %438 = vst.msk [vmem:[#allocation2] sm:$0xff] %vm260, %v436
    %439 = vst.msk [vmem:[#allocation2] sm:$0xff] %vm262, 0.0
    %441 = vrot.lane.b32.xlu0 %v426, 1
    %v442 = vpop.permute.xlu0 %441
    %444 = vst.msk [vmem:[#allocation2 + $0x8] sm:$0xff] %vm268, %v442
    %v445 = vsel %vm158, %v426, 0.0
    %446 = vst.msk [vmem:[#allocation2 + $0x10] sm:$0xff] %vm213, %v445
    %vm447 = vcmask 138368
    %448 = vst.msk [vmem:[#allocation2 + $0x10] sm:$0xff] %vm447, 0.0
    %v449 = vld [vmem:[#allocation2] sm:$0xff]
    %v450 = vld [vmem:[#allocation2 + $0x8] sm:$0xff]
    %v451 = vld [vmem:[#allocation2 + $0x10] sm:$0xff]
    %v452 = vpack.c.bf16 %v450, %v449
    %v453 = vpack.c.bf16 %v451, %v451
    %456 = vrot.lane.b32.xlu0 %v452, 127
    %v457 = vpop.permute.xlu0 %456
    %458 = vrot.lane.b32.xlu0 %v453, 127
    %v459 = vpop.permute.xlu0 %458
    %v462 = vsel %vm287, %v427, 0
    %v465 = vsel %vm291, %v459, 0
    %467 = vmatprep.subr.bf16.mxu0 0
    %468 = vmatpush1.bf16.msra.mxu0 %v457
    %469 = vmatprep.subr.bf16.mxu0 0
    %470 = vmatpush1.bf16.msra.mxu0 %v465
    %471 = vmatprep.subr.bf16.mxu0 0
    %472 = vmatpush1.bf16.msra.mxu0 0
    %473 = vmatprep.subr.bf16.mxu0 0
    %474 = vmatpush1.bf16.msra.mxu0 0
    %475 = vmatprep.subr.bf16.mxu0 0
    %476 = vmatpush1.bf16.msra.mxu0 0
    %477 = vmatprep.subr.bf16.mxu0 0
    %478 = vmatpush1.bf16.msra.mxu0 0
    %479 = vmatprep.subr.bf16.mxu0 0
    %480 = vmatpush1.bf16.msra.mxu0 0
    %481 = vmatprep.subr.bf16.mxu0 0
    %482 = vmatpush1.bf16.msra.mxu0 0
    %483 = vmatprep.subr.bf16.mxu0 0
    %484 = vmatpush1.bf16.msra.mxu0 0
    %485 = vmatprep.subr.bf16.mxu0 0
    %486 = vmatpush1.bf16.msra.mxu0 0
    %487 = vmatprep.subr.bf16.mxu0 0
    %488 = vmatpush1.bf16.msra.mxu0 0
    %489 = vmatprep.subr.bf16.mxu0 0
    %490 = vmatpush1.bf16.msra.mxu0 0
    %491 = vmatprep.subr.bf16.mxu0 0
    %492 = vmatpush1.bf16.msra.mxu0 0
    %493 = vmatprep.subr.bf16.mxu0 0
    %494 = vmatpush1.bf16.msra.mxu0 0
    %495 = vmatprep.subr.bf16.mxu0 0
    %496 = vmatpush1.bf16.msra.mxu0 0
    %497 = vmatprep.subr.bf16.mxu0 0
    %498 = vmatpush1.bf16.msra.mxu0 0
    %499 = vmatprep.mubr.bf16.mxu0 0
    %500 = vmatmul.mubr.bf16.gmra.mrb[0].mxu0 %v462
    %v501 = vpop.f32.mrb[0].mxu0
    %v502 = vadd.f32 0.0, %v501
    %v503 = vpop.f32.mrb[0].mxu0
    %v504 = vpop.f32.mrb[0].mxu0
    %v505 = vpop.f32.mrb[0].mxu0
    %506 = vdwg.mxu0
    %v507 = vsel %vm213, %v502, 0.0
    %508 = vadd.xlane.f32.xlu0 %v507
    %v509 = vpop.xlane.xlu0 %508
    %v510 = vmul.f32 %v502, %v502
    %v511 = vsel %vm213, %v510, 0.0
    %512 = vadd.xlane.f32.xlu0 %v511
    %v513 = vpop.xlane.xlu0 %512
    %v514 = vmul.f32 %v509, 0.0625
    %v515 = vmul.f32 %v513, 0.0625
    %v516 = vmul.f32 %v514, %v514
    %v517 = vsub.f32 %v515, %v516
    %v518 = vadd.f32 %v517, 1e-05
    %v519 = vrsqrt.pop %v518
    %v520 = vmul.f32 %v428, %v519
    %v521 = vmul.f32 %v514, %v520
    %v522 = vsub.f32 %v429, %v521
    %524 = vset.pattern.permute.xlu0 0
    %525 = vperm.xlu0 %524, %v520
    %v526 = vpop.permute.xlu0 %525
    %v528 = vmul.f32 %v502, %v526
    %530 = vset.pattern.permute.xlu0 0
    %531 = vperm.xlu0 %530, %v522
    %v532 = vpop.permute.xlu0 %531
    %v534 = vadd.f32 %v528, %v532
    %v535 = vmax.f32 %v534, 0.0
    %v536 = vsel %vm82, %v535, 0.0
    %538 = vrot.lane.b32.xlu0 %v536, 2
    %v539 = vpop.permute.xlu0 %538
    %541 = vst.msk [vmem:[#allocation2] sm:$0xff] %vm260, %v539
    %542 = vst.msk [vmem:[#allocation2] sm:$0xff] %vm262, 0.0
    %544 = vrot.lane.b32.xlu0 %v535, 1
    %v545 = vpop.permute.xlu0 %544
    %547 = vst.msk [vmem:[#allocation2 + $0x8] sm:$0xff] %vm268, %v545
    %v548 = vsel %vm158, %v535, 0.0
    %549 = vst.msk [vmem:[#allocation2 + $0x10] sm:$0xff] %vm213, %v548
    %550 = vst.msk [vmem:[#allocation2 + $0x10] sm:$0xff] %vm447, 0.0
    %v551 = vld [vmem:[#allocation2] sm:$0xff]
    %v552 = vld [vmem:[#allocation2 + $0x8] sm:$0xff]
    %v553 = vld [vmem:[#allocation2 + $0x10] sm:$0xff]
    %v554 = vpack.c.bf16 %v552, %v551
    %v555 = vpack.c.bf16 %v553, %v553
    %558 = vrot.lane.b32.xlu0 %v554, 127
    %v559 = vpop.permute.xlu0 %558
    %560 = vrot.lane.b32.xlu0 %v555, 127
    %v561 = vpop.permute.xlu0 %560
    %v564 = vsel %vm287, %v430, 0
    %v567 = vsel %vm291, %v561, 0
    %569 = vmatprep.subr.bf16.mxu0 0
    %570 = vmatpush1.bf16.msra.mxu0 %v559
    %571 = vmatprep.subr.bf16.mxu0 0
    %572 = vmatpush1.bf16.msra.mxu0 %v567
    %573 = vmatprep.subr.bf16.mxu0 0
    %574 = vmatpush1.bf16.msra.mxu0 0
    %575 = vmatprep.subr.bf16.mxu0 0
    %576 = vmatpush1.bf16.msra.mxu0 0
    %577 = vmatprep.subr.bf16.mxu0 0
    %578 = vmatpush1.bf16.msra.mxu0 0
    %579 = vmatprep.subr.bf16.mxu0 0
    %580 = vmatpush1.bf16.msra.mxu0 0
    %581 = vmatprep.subr.bf16.mxu0 0
    %582 = vmatpush1.bf16.msra.mxu0 0
    %583 = vmatprep.subr.bf16.mxu0 0
    %584 = vmatpush1.bf16.msra.mxu0 0
    %585 = vmatprep.subr.bf16.mxu0 0
    %586 = vmatpush1.bf16.msra.mxu0 0
    %587 = vmatprep.subr.bf16.mxu0 0
    %588 = vmatpush1.bf16.msra.mxu0 0
    %589 = vmatprep.subr.bf16.mxu0 0
    %590 = vmatpush1.bf16.msra.mxu0 0
    %591 = vmatprep.subr.bf16.mxu0 0
    %592 = vmatpush1.bf16.msra.mxu0 0
    %593 = vmatprep.subr.bf16.mxu0 0
    %594 = vmatpush1.bf16.msra.mxu0 0
    %595 = vmatprep.subr.bf16.mxu0 0
    %596 = vmatpush1.bf16.msra.mxu0 0
    %597 = vmatprep.subr.bf16.mxu0 0
    %598 = vmatpush1.bf16.msra.mxu0 0
    %599 = vmatprep.subr.bf16.mxu0 0
    %600 = vmatpush1.bf16.msra.mxu0 0
    %601 = vmatprep.mubr.bf16.mxu0 0
    %602 = vmatmul.mubr.bf16.gmra.mrb[0].mxu0 %v564
    %v603 = vpop.f32.mrb[0].mxu0
    %v604 = vadd.f32 0.0, %v603
    %v605 = vpop.f32.mrb[0].mxu0
    %v606 = vpop.f32.mrb[0].mxu0
    %v607 = vpop.f32.mrb[0].mxu0
    %608 = vdwg.mxu0
    %v609 = vsel %vm213, %v604, 0.0
    %610 = vadd.xlane.f32.xlu0 %v609
    %v611 = vpop.xlane.xlu0 %610
    %v612 = vmul.f32 %v604, %v604
    %v613 = vsel %vm213, %v612, 0.0
    %614 = vadd.xlane.f32.xlu0 %v613
    %v615 = vpop.xlane.xlu0 %614
    %v616 = vmul.f32 %v611, 0.0625
    %v617 = vmul.f32 %v615, 0.0625
    %v618 = vmul.f32 %v616, %v616
    %v619 = vsub.f32 %v617, %v618
    %v620 = vadd.f32 %v619, 1e-05
    %v621 = vrsqrt.pop %v620
    %v622 = vmul.f32 %v431, %v621
    %v623 = vmul.f32 %v616, %v622
    %v624 = vsub.f32 %v432, %v623
    %626 = vset.pattern.permute.xlu0 0
    %627 = vperm.xlu0 %626, %v622
    %v628 = vpop.permute.xlu0 %627
    %v630 = vmul.f32 %v604, %v628
    %632 = vset.pattern.permute.xlu0 0
    %633 = vperm.xlu0 %632, %v624
    %v634 = vpop.permute.xlu0 %633
    %v636 = vadd.f32 %v630, %v634
    %v637 = vadd.f32 %v636, %v425
    %v638 = vmax.f32 %v637, 0.0
    %639 = vst.msk [vmem:[#allocation3] sm:$0xff] %vm213, %v638
    %640 = vst.msk [vmem:[#allocation5] sm:$0xff] %vm213, %v637
    // Predicated region
    $region66: #{tpu_custom_call.1} parent=1 // pred_check
      _
    $region67: #{tpu_custom_call.1} parent=1 // pred_check_branch
      %642 = sbr.rel (0) target = $region69
    $region68: #{tpu_custom_call.1} parent=1 // pred_region
      %s644 = ssub.s32 128, 128
      %645 = vsyncadd [#allocation4], %s644
      %s647 = sshll.u32 [#allocation3], 4
      %s648 = int_to_ptr.vmem [resolvable:$true] %s647
      %650 = dma.vmem_to_hbm [thread:$0]  %s648, 128, %s16, [#allocation4]
    $region69: #{tpu_custom_call.1} parent=1 // pred_fallthru
      _
    // Predicated region
    $region70: #{tpu_custom_call.1} parent=1 // pred_check
      _
    $region71: #{tpu_custom_call.1} parent=1 // pred_check_branch
      %652 = sbr.rel (0) target = $region73
    $region72: #{tpu_custom_call.1} parent=1 // pred_region
      %s654 = ssub.s32 128, 128
      %655 = vsyncadd [#allocation6], %s654
      %s657 = sshll.u32 [#allocation5], 4
      %s658 = int_to_ptr.vmem [resolvable:$true] %s657
      %660 = dma.vmem_to_hbm [thread:$0]  %s658, 128, %s17, [#allocation6]
    $region73: #{tpu_custom_call.1} parent=1 // pred_fallthru
      _
    // Predicated region
    $region74: #{tpu_custom_call.1} parent=1 // pred_check
      _
    $region75: #{tpu_custom_call.1} parent=1 // pred_check_branch
      %662 = sbr.rel (0) target = $region77
    $region76: #{tpu_custom_call.1} parent=1 // pred_region
      %663 = dma.done [#allocation4], 128
    $region77: #{tpu_custom_call.1} parent=1 // pred_fallthru
      _
    // Predicated region
    $region78: #{tpu_custom_call.1} parent=1 // pred_check
      _
    $region79: #{tpu_custom_call.1} parent=1 // pred_check_branch
      %665 = sbr.rel (0) target = $region81
    $region80: #{tpu_custom_call.1} parent=1 // pred_region
      %666 = dma.done [#allocation6], 128
    $region81: #{tpu_custom_call.1} parent=1 // pred_fallthru
      _
    %667 = vsyncpa [#allocation4], 1
    %668 = vsyncpa [#allocation6], 1

</llo_original>
